<compile_context>
chip_gen: v7x
topology: tpu7x:2x2x1
jax: 0.10.0
libtpu: 0.0.40
codegen_flags: <defaults>
</compile_context>

<pallas_src>
import functools

import numpy as np
import jax
import jax.numpy as jnp
from jax.experimental import pallas as pl
from jax.experimental.pallas import tpu as pltpu

TEMPERATURE = 1.0
IGNORE_LABEL = 255
EPS = 1e-6

_PAD_A_LABEL = -2.0   # sentinel label for padded A rows   (never matches 0/1/-1)
_PAD_C_LABEL = -1.0   # sentinel label for padded C columns (never matches 0/1/-2)
_NEG_BIG = -1e30
_VMEM_LIMIT = 32 * 1024 * 1024   # <= default scoped VMEM on v6e/v7x, raises v5e


def _round_up(x, m):
    return ((x + m - 1) // m) * m


# ---------------------------------------------------------------------------
# Kernel 1: F.normalize(x, p=2, dim=1, eps=1e-6) on NCHW, lane-dense layout
# ---------------------------------------------------------------------------
def _l2norm_kernel(x_ref, o_ref, *, eps):
    x = x_ref[...]                                    # (1, E, T) f32
    ssq = jnp.sum(x * x, axis=1, keepdims=True)       # (1, 1, T)
    # 1 / max(||x||, eps) == rsqrt(max(ssq, eps^2));  rsqrt -> EUP slot.
    inv = jax.lax.rsqrt(jnp.maximum(ssq, eps * eps))
    o_ref[...] = (x * inv).astype(o_ref.dtype)        # bf16 store (half the HBM write)


def l2_normalize_nchw(x, eps=EPS, out_dtype=jnp.bfloat16):
    x = x.astype(jnp.float32)
    B, E, H, W = x.shape
    HW = H * W
    x3 = x.reshape(B, E, HW)          # free view of the contiguous NCHW buffer

    hw_pad = _round_up(HW, 128)       # keep the lane axis a multiple of 128
    if hw_pad != HW:
        x3 = jnp.pad(x3, ((0, 0), (0, 0), (0, hw_pad - HW)))

    # Largest spatial tile that divides hw_pad and keeps the (in f32 + out
    # bf16) block comfortably inside even v5e's 16 MiB default scoped VMEM.
    out_itemsize = np.dtype(out_dtype).itemsize
    budget = 4 * 1024 * 1024
    tile = 128
    for t in (2048, 1024, 512, 256, 128):
        if hw_pad % t == 0 and E * t * (4 + out_itemsize) <= budget:
            tile = t
            break
    grid = (B, hw_pad // tile)

    out = pl.pallas_call(
        functools.partial(_l2norm_kernel, eps=float(eps)),
        out_shape=jax.ShapeDtypeStruct((B, E, hw_pad), out_dtype),
        grid=grid,
        in_specs=[pl.BlockSpec((1, E, tile), lambda b, t: (b, 0, t))],
        out_specs=pl.BlockSpec((1, E, tile), lambda b, t: (b, 0, t)),
        compiler_params=pltpu.CompilerParams(
            dimension_semantics=("parallel", "parallel"),
            vmem_limit_bytes=_VMEM_LIMIT),
    )(x3)

    if hw_pad != HW:
        out = out[:, :, :HW]
    return out.reshape(B, E, H, W)


# ---------------------------------------------------------------------------
# Kernel 2: supervised-contrastive loss, tiled with online log-sum-exp.
# All inner-loop statistics are lane-partial (TM, 128); the only cross-lane
# reductions happen once per row tile in the finalize block.
# ---------------------------------------------------------------------------
def _supcon_kernel(a_ref, ct_ref, al_ref, cl_ref, den_ref, out_ref,
                   m_sc, l_sc, num_sc, *, pad_chunk_start):
    j = pl.program_id(1)     # P tile index  (reduction, arbitrary)

    @pl.when(j == 0)
    def _():
        m_sc[...] = jnp.full_like(m_sc, _NEG_BIG)
        l_sc[...] = jnp.zeros_like(l_sc)
        num_sc[...] = jnp.zeros_like(num_sc)

    # Raw logits tile (TM, TP); bf16 operands, f32 MXU accumulation.
    # 1/temperature is already folded into A on the host.
    s = jax.lax.dot_general(
        a_ref[...], ct_ref[...], (((1,), (0,)), ((), ())),
        preferred_element_type=jnp.float32)

    al = al_ref[...]                       # (TM, 1)  f32 labels (-2 = row pad)
    cl = cl_ref[...]                       # (1, TP)  f32 labels (-1 = col pad)

    n_chunks = s.shape[1] // 128

    # Pass 1: lane-partial running max (VALU only).  Only the trailing chunks
    # of the last P tile can hold padded columns (trace-time decision); the
    # label sentinel makes the mask a no-op on every other tile.
    m_prev = m_sc[...]
    m_new = m_prev
    chunks = []
    for k in range(n_chunks):
        s_k = s[:, k * 128:(k + 1) * 128]
        cl_k = cl[:, k * 128:(k + 1) * 128]
        if k >= pad_chunk_start:
            s_lse_k = jnp.where(cl_k >= 0.0, s_k, _NEG_BIG)
        else:
            s_lse_k = s_k
        chunks.append((s_k, s_lse_k, cl_k))
        m_new = jnp.maximum(m_new, s_lse_k)

    # Pass 2: lane-partial exp-sum and sum(raw_logits * pos)  (VALU + EUP).
    l_acc = l_sc[...] * jnp.exp(m_prev - m_new)
    num_acc = num_sc[...]
    for s_k, s_lse_k, cl_k in chunks:
        l_acc = l_acc + jnp.exp(s_lse_k - m_new)
        num_acc = num_acc + jnp.where(al == cl_k, s_k, 0.0)

    m_sc[...] = m_new
    l_sc[...] = l_acc
    num_sc[...] = num_acc

    @pl.when(j == pl.num_programs(1) - 1)
    def _():
        m_lane = m_sc[...]                                        # (TM, 128)
        m_row = jnp.max(m_lane, axis=1, keepdims=True)            # (TM, 1) XLU
        l_row = jnp.sum(l_sc[...] * jnp.exp(m_lane - m_row),
                        axis=1, keepdims=True)                    # (TM, 1) XLU
        lse = m_row + jnp.log(l_row)
        num_row = jnp.sum(num_sc[...], axis=1, keepdims=True)     # (TM, 1) XLU
        den = den_ref[...]                                        # (TM, 1) precomputed
        row_val = (num_row - lse * den) / jnp.maximum(den, 1.0)
        partial = jnp.sum(row_val)           # padded rows (den=0, num=0) give 0
        out_ref[...] = jnp.broadcast_to(partial, out_ref.shape).astype(jnp.float32)


def supcon_loss(A, C, A_labels, C_labels, temperature=TEMPERATURE,
                *, tm=256, tp=512):
    """A: (M,E), C: (P,E) features (any float dtype); labels: (M,), (P,)."""
    A = np.asarray(A)
    C = np.asarray(C)
    A_labels = np.asarray(A_labels, np.float32)
    C_labels = np.asarray(C_labels, np.float32)
    M, E = A.shape
    P = C.shape[0]
    if M == 0 or P == 0:
        # Reference takes a mean over zero rows -> NaN; keep that semantic.
        return jnp.array(np.nan, jnp.float32)

    bf16 = jnp.bfloat16
    inv_temp = 1.0 / float(temperature)

    m_pad = _round_up(M, tm)
    p_pad = _round_up(P, tp)
    grid_m, grid_p = m_pad // tm, p_pad // tp
    n_chunks = tp // 128
    pad_chunk_start = (n_chunks if p_pad == P
                       else (P - (grid_p - 1) * tp) // 128)

    # ---- host-side prep (pad, fold 1/T into A, cast bf16, transpose C) ----
    A32 = A.astype(np.float32)
    if inv_temp != 1.0:
        A32 = A32 * np.float32(inv_temp)
    a_host = np.zeros((m_pad, E), dtype=bf16)
    a_host[:M] = A32.astype(bf16)
    ct_host = np.zeros((E, p_pad), dtype=bf16)
    ct_host[:, :P] = C.astype(np.float32).T.astype(bf16)

    al_host = np.full((m_pad, 1), _PAD_A_LABEL, np.float32)
    al_host[:M, 0] = A_labels
    cl_host = np.full((1, p_pad), _PAD_C_LABEL, np.float32)
    cl_host[0, :P] = C_labels

    # Per-row positive count (labels only): matches minus the self-pair.
    uniq, counts = np.unique(C_labels, return_counts=True)
    idx = np.minimum(np.searchsorted(uniq, A_labels), len(uniq) - 1)
    match_count = np.where(uniq[idx] == A_labels, counts[idx], 0).astype(np.float32)
    m_diag = min(M, P)     # construct_sets gives C[:M] == A positionally
    diag_pos = np.zeros(M, np.float32)
    diag_pos[:m_diag] = (A_labels[:m_diag] == C_labels[:m_diag]).astype(np.float32)
    den_excl = match_count - diag_pos
    den_host = np.zeros((m_pad, 1), np.float32)
    den_host[:M, 0] = den_excl

    a_dev = jnp.asarray(a_host)
    ct_dev = jnp.asarray(ct_host)
    al_dev = jnp.asarray(al_host)
    cl_dev = jnp.asarray(cl_host)
    den_dev = jnp.asarray(den_host)

    cost = pl.CostEstimate(
        flops=2 * m_pad * p_pad * E + 8 * m_pad * p_pad,
        transcendentals=m_pad * (p_pad + 128 * grid_p),
        bytes_accessed=(grid_p * m_pad * E + grid_m * p_pad * E) * 2
        + grid_p * (m_pad * 2 + p_pad) * 4 + grid_m * 8 * 128 * 4)

    kernel = functools.partial(_supcon_kernel, pad_chunk_start=pad_chunk_start)

    partials = pl.pallas_call(
        kernel,
        out_shape=jax.ShapeDtypeStruct((grid_m, 8, 128), jnp.float32),
        grid_spec=pltpu.PrefetchScalarGridSpec(
            num_scalar_prefetch=0,
            grid=(grid_m, grid_p),
            in_specs=[
                pl.BlockSpec((tm, E), lambda i, j: (i, 0)),
                pl.BlockSpec((E, tp), lambda i, j: (0, j)),
                pl.BlockSpec((tm, 1), lambda i, j: (i, 0)),
                pl.BlockSpec((1, tp), lambda i, j: (0, j)),
                pl.BlockSpec((tm, 1), lambda i, j: (i, 0)),
            ],
            out_specs=pl.BlockSpec((1, 8, 128), lambda i, j: (i, 0, 0)),
            scratch_shapes=[pltpu.VMEM((tm, 128), jnp.float32) for _ in range(3)],
        ),
        compiler_params=pltpu.CompilerParams(
            dimension_semantics=("parallel", "arbitrary"),
            vmem_limit_bytes=_VMEM_LIMIT),
        cost_estimate=cost,
    )(a_dev, ct_dev, al_dev, cl_dev, den_dev)

    kernel_sum = jnp.sum(partials[:, 0, 0])

    # Diagonal (self-pair) exclusion, applied OUTSIDE the kernel: the in-kernel
    # num includes s_ii for rows whose label matches C_labels[i], so subtract
    # sum_i s_ii / clamp(den_i, 1).  Tiny O(M*E) rowwise dot on the same bf16
    # tensors fed to the MXU (1/T already folded into A).
    if m_diag > 0:
        diag_s = jnp.sum(a_dev[:m_diag].astype(jnp.float32)
                         * ct_dev[:, :m_diag].astype(jnp.float32).T, axis=1)
        dp = jnp.asarray(diag_pos[:m_diag])
        dd = jnp.asarray(np.maximum(den_excl[:m_diag], 1.0).astype(np.float32))
        corr = jnp.sum(dp * diag_s / dd)
    else:
        corr = jnp.float32(0.0)

    return -(kernel_sum - corr) / jnp.float32(M)


# ---------------------------------------------------------------------------
# Host-side glue: reproduces construct_sets (data-dependent shapes + randperm)
# ---------------------------------------------------------------------------
def construct_sets(z_mix_n, y_mix, z_out_n, rng, z_out_valid_mask=None):
    B, E, Hm, Wm = z_mix_n.shape
    _, _, Ho, Wo = z_out_n.shape
    # NOTE: matches torch `.view(B, H*W, E)` on a contiguous NCHW buffer
    # (a raw reinterpretation, NOT a permute) -- reproduced exactly.
    z_mix_flat = np.asarray(z_mix_n).reshape(B, Hm * Wm, E)
    y_flat = np.asarray(y_mix).reshape(B, Hm * Wm)

    in_emb = z_mix_flat[(y_flat == 0) & (y_flat != IGNORE_LABEL)]
    out_emb = z_mix_flat[y_flat == 1]
    if z_out_valid_mask is not None:
        z_out_nhwc = np.transpose(np.asarray(z_out_n), (0, 2, 3, 1))
        z_out_flat = z_out_nhwc[np.asarray(z_out_valid_mask)]
    else:
        z_out_flat = np.asarray(z_out_n).reshape(B * Ho * Wo, E)

    N = min(in_emb.shape[0], out_emb.shape[0], z_out_flat.shape[0])
    A_in = in_emb[rng.permutation(in_emb.shape[0])][:N]
    A_ood = out_emb[rng.permutation(out_emb.shape[0])][:N]
    B_ood = z_out_flat[rng.permutation(z_out_flat.shape[0])][:N]

    A = np.concatenate([A_in, A_ood], axis=0)
    A_labels = np.concatenate([np.zeros(N, np.float32), np.ones(N, np.float32)])
    C = np.concatenate([A_in, A_ood, B_ood], axis=0)
    C_labels = np.concatenate(
        [np.zeros(N, np.float32), np.ones(N, np.float32), np.ones(N, np.float32)])
    return A, A_labels, C, C_labels


def supervised_contrastive_2d(z_mix, y_mix, z_out, z_out_valid_mask=None,
                              temperature=TEMPERATURE, rng=None):
    if rng is None:
        rng = np.random.default_rng(0)
    z_mix_n = l2_normalize_nchw(z_mix)
    z_out_n = l2_normalize_nchw(z_out)
    A, A_labels, C, C_labels = construct_sets(
        z_mix_n, y_mix, z_out_n, rng, z_out_valid_mask)
    return supcon_loss(A, C, A_labels, C_labels, temperature)


# ---------------------------------------------------------------------------
# Pure-JAX reference (for in-script self-check only)
# ---------------------------------------------------------------------------
def _supcon_reference(A, C, A_labels, C_labels, temperature):
    logits = (A @ C.T) / temperature
    logits = logits - jnp.max(logits, axis=1, keepdims=True)
    logp = jax.nn.log_softmax(logits, axis=1)
    M, P = A.shape[0], C.shape[0]
    row = jnp.arange(M)[:, None]
    col = jnp.arange(P)[None, :]
    diag_mask = ~((row == col) & (col < M))
    pos = ((A_labels[:, None] == C_labels[None, :]) & diag_mask).astype(jnp.float32)
    num = jnp.sum(logp * pos, axis=1)
    den = jnp.maximum(jnp.sum(pos, axis=1), 1.0)
    return -jnp.mean(num / den)


if __name__ == "__main__":
    key = jax.random.PRNGKey(0)
    k1, k2, k3 = jax.random.split(key, 3)

    B, E, Hm, Wm = 2, 4, 16, 16     # z_mix: (B, E, Hm, Wm)  NCHW
    Ho, Wo = 8, 8                   # z_out: (B, E, Ho, Wo)  NCHW

    z_mix = jax.random.normal(k1, (B, E, Hm, Wm), jnp.float32)
    z_out = jax.random.normal(k2, (B, E, Ho, Wo), jnp.float32)
    # labels in {0 (inlier), 1 (outlier), 255 (ignore)}
    y_raw = jax.random.randint(k3, (B, Hm, Wm), 0, 3)
    y_mix = jnp.where(y_raw == 2, IGNORE_LABEL, y_raw).astype(jnp.int32)

    loss = supervised_contrastive_2d(z_mix, y_mix, z_out,
                                     temperature=TEMPERATURE,
                                     rng=np.random.default_rng(0))
    loss = jax.block_until_ready(loss)
    assert np.isfinite(np.asarray(loss)), "loss is not finite"

    # Self-check the tiled online-LSE kernel against a pure-JAX reference on
    # the exact same (deterministic) A/C sets; tolerance covers bf16 inputs.
    z_mix_n = l2_normalize_nchw(z_mix)
    z_out_n = l2_normalize_nchw(z_out)
    A, Al, C, Cl = construct_sets(z_mix_n, y_mix, z_out_n,
                                  np.random.default_rng(0))
    ref = _supcon_reference(jnp.asarray(np.asarray(A, np.float32)),
                            jnp.asarray(np.asarray(C, np.float32)),
                            jnp.asarray(Al), jnp.asarray(Cl), TEMPERATURE)
    np.testing.assert_allclose(np.asarray(loss), np.asarray(ref),
                               rtol=5e-2, atol=5e-2)
    print("KERNEL_OK")
</pallas_src>

<mosaic_0001>
module attributes {stable_mosaic.version = 11 : i64} {
  func.func @_l2norm_kernel(%arg0: i32, %arg1: i32, %arg2: memref<1x4x256xf32, #tpu.memory_space<vmem>>, %arg3: memref<1x4x256xbf16, #tpu.memory_space<vmem>>) attributes {dimension_semantics = [#tpu.dimension_semantics<parallel>, #tpu.dimension_semantics<parallel>], iteration_bounds = array<i64: 2, 1>, scalar_prefetch = 0 : i64, scratch_operands = 0 : i64, tpu.core_type = #tpu.core_type<tc>, window_params = [{transform_indices = @transform_0, window_bounds = array<i64: 1, 4, 256>}, {transform_indices = @transform_1, window_bounds = array<i64: 1, 4, 256>}]} {
    %c0 = arith.constant 0 : index
    %c0_0 = arith.constant 0 : index
    %c0_1 = arith.constant 0 : index
    %0 = vector.load %arg2[%c0, %c0_0, %c0_1] : memref<1x4x256xf32, #tpu.memory_space<vmem>>, vector<1x4x256xf32>
    %1 = arith.mulf %0, %0 : vector<1x4x256xf32>
    %cst = arith.constant dense<0.000000e+00> : vector<1x256xf32>
    %2 = vector.multi_reduction <add>, %1, %cst [1] : vector<1x4x256xf32> to vector<1x256xf32>
    %3 = vector.shape_cast %2 : vector<1x256xf32> to vector<1x1x256xf32>
    %cst_2 = arith.constant 9.99999996E-13 : f32
    %4 = vector.broadcast %cst_2 : f32 to vector<1x1x256xf32>
    %5 = arith.maximumf %3, %4 : vector<1x1x256xf32>
    %6 = math.rsqrt %5 : vector<1x1x256xf32>
    %7 = vector.broadcast %6 : vector<1x1x256xf32> to vector<1x4x256xf32>
    %8 = arith.mulf %0, %7 : vector<1x4x256xf32>
    %9 = arith.truncf %8 : vector<1x4x256xf32> to vector<1x4x256xbf16>
    %c0_3 = arith.constant 0 : index
    %c0_4 = arith.constant 0 : index
    %c0_5 = arith.constant 0 : index
    %10 = vector.load %arg3[%c0_3, %c0_4, %c0_5] : memref<1x4x256xbf16, #tpu.memory_space<vmem>>, vector<1x4x256xbf16>
    tpu.vector_store %arg3[%c0_3, %c0_4, %c0_5], %9 {strides = array<i32>} : memref<1x4x256xbf16, #tpu.memory_space<vmem>>, vector<1x4x256xbf16>,
    return
  }
  func.func @transform_0(%arg0: i32, %arg1: i32) -> (i32, i32, i32) {
    %c0_i32 = arith.constant 0 : i32
    %c0_i32_0 = arith.constant 0 : i32
    return %arg0, %c0_i32, %arg1 : i32, i32, i32
  }
  func.func @transform_1(%arg0: i32, %arg1: i32) -> (i32, i32, i32) {
    %c0_i32 = arith.constant 0 : i32
    %c0_i32_0 = arith.constant 0 : i32
    return %arg0, %c0_i32, %arg1 : i32, i32, i32
  }
}

</mosaic_0001>

<llo_original>
// kernel: tpu_custom_call.1
$region0: #{tpu_custom_call.1}
  #allocation0 [shape = 'u32[]', space=smem, size = 0x4, offset = 0x4, fixed_abs, tag = 'smem constant byte address 0x4 - core index']
  #allocation1 [shape = 'u32[144,128]{1,0:T(1,128)}', space=vmem, size = 0x12000, scoped, tag = 'internal scratch']
  %s0 = inlined_call_operand.hbm [shape: f32[2,4,256], index: 0, kind: input, shape index: {}]
  %s1 = inlined_call_operand.hbm [shape: bf16[2,4,256], index: 1, kind: output, shape index: {}]
  %s2 = sld [smem:[#allocation0]]
  $region41: #{tpu_custom_call.1} parent=0
    _
  %s4 = ssub.s32 1, %s2
  %s5 = scalar_select 0, %s4, %s2
  $region1: #{tpu_custom_call.1} parent=0
    #allocation2 [shape = 'u8[8192]{0}', space=vmem, size = 0x2000, scoped, tag = 'input window, operand 0']
    #allocation3 [shape = 's32[2]{0}', space=sflag, size = 0x8, scoped, tag = 'scoped memory for tpu_custom_call.1']
    #allocation4 [shape = 's32[2]{0}', space=sflag, size = 0x8, scoped, tag = 'scoped memory for tpu_custom_call.1']
    #allocation5 [shape = 'u8[4096]{0}', space=vmem, size = 0x1000, scoped, tag = 'output window, operand 0']
    %6 = vsyncpa [#allocation3], 0
    %s7 = scalar_lea.sflag [#allocation3], 1
    %8 = vsyncpa %s7, 0
    %9 = vsyncpa [#allocation4], 0
    %s10 = scalar_lea.sflag [#allocation4], 1
    %11 = vsyncpa %s10, 0
    loop: start=0, step=1, limit=4
    $region2: #{tpu_custom_call.1} parent=1 // loop_pre_header
      _
    $region3: #{tpu_custom_call.1} parent=1 // loop_header
      %s13 = sphi 0, %s17
      %p14 = scmp.ge.s32.totalorder %s13, 4
      %s20 = sphi 0, %s32
      %s21 = sphi 0, %s28
      %s22 = sphi 0, %s20
      %s23 = sphi 0, %s21
      %s24 = sphi 0, %s22
      %s25 = sphi 0, %s23
      %s37 = sphi 0, %s39
      %s40 = sphi 0, %s37
      %s41 = sphi 0, %s40
      %s57 = sphi 0, %s41
      %s65 = sphi 0, %s67
      %s68 = sphi 0, %s65
      %s69 = sphi 0, %s68
      %s85 = sphi 0, %s69
    $region4: #{tpu_custom_call.1} parent=1 // loop_header_branch
      %16 = sbr.rel (%p14) target = $region8
    $region5: #{tpu_custom_call.1} parent=1 // loop_body
      %s18 = ssub.s32 %s13, 1
      %s19 = ssub.s32 %s13, 2
      %s26 = sadd.s32 1, %s21
      %p27 = scmp.ge.s32.totalorder %s26, 1
      %s28 = scalar_select %p27, 0, %s26
      %s29 = sadd.s32 1, %s20
      %s30 = scalar_select %p27, %s29, %s20
      %p31 = scmp.ge.s32.totalorder %s30, 2
      %s32 = scalar_select %p31, 0, %s30
      %s33 = ssub.s32 %s20, %s32
      %s34 = ssub.s32 %s21, %s28
      %s35 = sor.u32 %s33, %s34
      %p36 = scmp.eq.s32.totalorder %s35, 0
      %s38 = sadd.s32 %s37, 1
      %s39 = scalar_select %p36, %s37, %s38
      %p42 = pneg %p36
      %p43 = scmp.eq.s32.totalorder %s13, 1
      %p44 = por %p42, %p43
      %p45 = scmp.ne.s32.totalorder %s37, %s40
      %p46 = scmp.eq.s32.totalorder %s13, 0
      %p47 = por %p45, %p46
      %p48 = scmp.ne.s32.totalorder %s37, %s40
      %p49 = scmp.eq.s32.totalorder %s18, 1
      %p50 = por %p48, %p49
      %p51 = scmp.ne.s32.totalorder %s40, %s41
      %p52 = scmp.eq.s32.totalorder %s18, 0
      %p53 = por %p51, %p52
      %p54 = scmp.ne.s32.totalorder %s40, %s41
      %p55 = scmp.eq.s32.totalorder %s19, 1
      %p56 = por %p54, %p55
      %p58 = scmp.ne.s32.totalorder %s41, %s57
      %p59 = scmp.eq.s32.totalorder %s19, 0
      %p60 = por %p58, %p59
      %s61 = ssub.s32 %s20, %s32
      %s62 = ssub.s32 %s21, %s28
      %s63 = sor.u32 %s61, %s62
      %p64 = scmp.eq.s32.totalorder %s63, 0
      %s66 = sadd.s32 %s65, 1
      %s67 = scalar_select %p64, %s65, %s66
      %p70 = pneg %p64
      %p71 = scmp.eq.s32.totalorder %s13, 1
      %p72 = por %p70, %p71
      %p73 = scmp.ne.s32.totalorder %s65, %s68
      %p74 = scmp.eq.s32.totalorder %s13, 0
      %p75 = por %p73, %p74
      %p76 = scmp.ne.s32.totalorder %s65, %s68
      %p77 = scmp.eq.s32.totalorder %s18, 1
      %p78 = por %p76, %p77
      %p79 = scmp.ne.s32.totalorder %s68, %s69
      %p80 = scmp.eq.s32.totalorder %s18, 0
      %p81 = por %p79, %p80
      %p82 = scmp.ne.s32.totalorder %s68, %s69
      %p83 = scmp.eq.s32.totalorder %s19, 1
      %p84 = por %p82, %p83
      %p86 = scmp.ne.s32.totalorder %s69, %s85
      %p87 = scmp.eq.s32.totalorder %s19, 0
      %p88 = por %p86, %p87
      %p89 = scmp.le.s32.totalorder 1, %s13
      %p90 = scmp.lt.s32.totalorder %s13, 3
      %p91 = pnand %p89, %p90
      %p92 = pneg %p91
      // Predicated region
      $region9: #{tpu_custom_call.1} parent=5 // pred_check
        _
      $region10: #{tpu_custom_call.1} parent=5 // pred_check_branch
        %94 = sbr.rel (%p91) target = $region12
      $region11: #{tpu_custom_call.1} parent=5 // pred_region
        %s95 = ssub.s32 %s13, 1
      $region12: #{tpu_custom_call.1} parent=5 // pred_fallthru
        _
      %p96 = scmp.lt.s32.totalorder %s13, 2
      // Predicated region
      $region13: #{tpu_custom_call.1} parent=5 // pred_check
        %p97 = pneg %p96
      $region14: #{tpu_custom_call.1} parent=5 // pred_check_branch
        %99 = sbr.rel (%p97) target = $region16
      $region15: #{tpu_custom_call.1} parent=5 // pred_region
        // Predicated region
        $region17: #{tpu_custom_call.1} parent=15 // pred_check
          %p100 = pneg %p47
        $region18: #{tpu_custom_call.1} parent=15 // pred_check_branch
          %102 = sbr.rel (%p100) target = $region20
        $region19: #{tpu_custom_call.1} parent=15 // pred_region
          %s103 = sand.u32 %s37, 1
          %s104 = scalar_lea.sflag [#allocation3], %s103
          %s105 = sand.u32 %s37, 1
          %s106 = smul.addr %s105, 8
          %s107 = scalar_lea.vmem [#allocation2], %s106
          %s108 = smul.u32 2, %s21
          %s110 = ssub.s32 128, 128
          %111 = vsyncadd %s104, %s110
          %s112 = smul.addr %s20, 2
          %s113 = sadd.s32 %s108, %s112
          %s114 = smul.addr %s113, 64
          %s115 = scalar_lea.hbm %s0, %s114
          %s117 = sshll.u32 %s107, 4
          %s118 = int_to_ptr.vmem [resolvable:$true] %s117
          %120 = dma.hbm_to_vmem [thread:$0]  %s115, 128, %s118, %s104
        $region20: #{tpu_custom_call.1} parent=15 // pred_fallthru
          _
      $region16: #{tpu_custom_call.1} parent=5 // pred_fallthru
        _
      %p121 = scmp.le.s32.totalorder 1, %s13
      %p122 = scmp.lt.s32.totalorder %s13, 3
      %p123 = pnand %p121, %p122
      %p124 = pneg %p123
      // Predicated region
      $region21: #{tpu_custom_call.1} parent=5 // pred_check
        _
      $region22: #{tpu_custom_call.1} parent=5 // pred_check_branch
        %126 = sbr.rel (%p123) target = $region24
      $region23: #{tpu_custom_call.1} parent=5 // pred_region
        %s127 = ssub.s32 %s13, 1
        %s128 = sand.u32 %s40, 1
        %s129 = scalar_lea.sflag [#allocation3], %s128
        %s130 = sand.u32 %s40, 1
        %s131 = smul.addr %s130, 8
        %s132 = scalar_lea.vmem [#allocation2], %s131
        // Predicated region
        $region25: #{tpu_custom_call.1} parent=23 // pred_check
          %p133 = pneg %p53
        $region26: #{tpu_custom_call.1} parent=23 // pred_check_branch
          %135 = sbr.rel (%p133) target = $region28
        $region27: #{tpu_custom_call.1} parent=23 // pred_region
          %136 = dma.done %s129, 128
        $region28: #{tpu_custom_call.1} parent=23 // pred_fallthru
          _
        %s137 = sand.u32 %s40, 1
        %s138 = scalar_lea.sflag [#allocation3], %s137
        %s139 = sand.u32 %s40, 1
        %s140 = smul.addr %s139, 8
        %s141 = scalar_lea.vmem [#allocation2], %s140
        %p142 = pneg %p53
        %p143 = pneg %p50
        %p144 = pneg %p81
        %p145 = pneg %p78
        %s146 = sand.u32 %s68, 1
        %s147 = scalar_lea.sflag [#allocation4], %s146
        %s148 = sand.u32 %s68, 1
        %s149 = smul.addr %s148, 4
        %s150 = scalar_lea.vmem [#allocation5], %s149
        %s151 = smul.u32 2, %s23
        %s152 = smul.u32 2, %s23
        %v153 = vld [vmem:[%s132] sm:$0xff]
        %v154 = vmul.f32 %v153, %v153
        %v156 = vcombine.high %v154, %v154
        %vm158 = vcmask 1043456
        %v159 = vsel %vm158, %v154, 0.0
        %v160 = vrot.slane %v159, 4
        %v161 = vadd.f32 %v159, %v160
        %v162 = vrot.slane %v161, 2
        %v163 = vadd.f32 %v161, %v162
        %v164 = vrot.slane %v163, 1
        %v165 = vadd.f32 %v163, %v164
        %v166 = vsel %vm158, %v156, 0.0
        %v167 = vrot.slane %v166, 4
        %v168 = vadd.f32 %v166, %v167
        %v169 = vrot.slane %v168, 2
        %v170 = vadd.f32 %v168, %v169
        %v171 = vrot.slane %v170, 1
        %v172 = vadd.f32 %v170, %v171
        %v173 = vmax.f32 %v165, 1e-12
        %v174 = vmax.f32 %v172, 1e-12
        %v175 = vrsqrt.pop %v173
        %v176 = vrsqrt.pop %v174
        %v179 = vcombine.low %v175, %v176
        %v181 = vmul.f32 %v153, %v179
        %v183 = vcombine.high %v181, %v181
        %v185 = vpack.c.bf16 %v181, %v181
        %v186 = vpack.c.bf16 %v183, %v183
        %v189 = vcombine.low %v185, %v186
        %v191 = vunpack.c.l.s4 1983009808
        %v192 = vunpack.c.0.s8 %v191
        %v193 = vlaneseq
        %v194 = vshrl.u32 %v193, 7
        %v195 = vsub.s32 %v192, %v194
        %v196 = vrot.slane %v189, %v195
        %198 = vst [vmem:[%s150] sm:$0xf] %v196
        %s199 = sand.u32 %s68, 1
        %s200 = scalar_lea.sflag [#allocation4], %s199
        %s201 = sand.u32 %s68, 1
        %s202 = smul.addr %s201, 4
        %s203 = scalar_lea.vmem [#allocation5], %s202
        // Predicated region
        $region29: #{tpu_custom_call.1} parent=23 // pred_check
          %p204 = pneg %p78
        $region30: #{tpu_custom_call.1} parent=23 // pred_check_branch
          %206 = sbr.rel (%p204) target = $region32
        $region31: #{tpu_custom_call.1} parent=23 // pred_region
          %s207 = smul.u32 2, %s23
          %s209 = ssub.s32 64, 64
          %210 = vsyncadd %s200, %s209
          %s211 = smul.addr %s22, 2
          %s212 = sadd.s32 %s207, %s211
          %s213 = smul.addr %s212, 32
          %s214 = scalar_lea.hbm %s1, %s213
          %s216 = sshll.u32 %s203, 4
          %s217 = int_to_ptr.vmem [resolvable:$true] %s216
          %219 = dma.vmem_to_hbm [thread:$0]  %s217, 64, %s214, %s200
        $region32: #{tpu_custom_call.1} parent=23 // pred_fallthru
          _
      $region24: #{tpu_custom_call.1} parent=5 // pred_fallthru
        _
      %p220 = scmp.le.s32.totalorder 2, %s13
      // Predicated region
      $region33: #{tpu_custom_call.1} parent=5 // pred_check
        %p221 = pneg %p220
      $region34: #{tpu_custom_call.1} parent=5 // pred_check_branch
        %223 = sbr.rel (%p221) target = $region36
      $region35: #{tpu_custom_call.1} parent=5 // pred_region
        %s224 = ssub.s32 %s13, 2
        // Predicated region
        $region37: #{tpu_custom_call.1} parent=35 // pred_check
          %p225 = pneg %p84
        $region38: #{tpu_custom_call.1} parent=35 // pred_check_branch
          %227 = sbr.rel (%p225) target = $region40
        $region39: #{tpu_custom_call.1} parent=35 // pred_region
          %s228 = sand.u32 %s69, 1
          %s229 = scalar_lea.sflag [#allocation4], %s228
          %s230 = sand.u32 %s69, 1
          %s231 = smul.addr %s230, 4
          %s232 = scalar_lea.vmem [#allocation5], %s231
          %233 = dma.done %s229, 64
        $region40: #{tpu_custom_call.1} parent=35 // pred_fallthru
          _
      $region36: #{tpu_custom_call.1} parent=5 // pred_fallthru
        _
    $region6: #{tpu_custom_call.1} parent=1 // loop_footer
      %s17 = sadd.s32 1, %s13
    $region7: #{tpu_custom_call.1} parent=1 // loop_footer_branch
      %12 = sbr.rel target = $region3
    $region8: #{tpu_custom_call.1} parent=1 // loop_exit
      _
    %234 = vsyncpa [#allocation3], 1
    %s235 = scalar_lea.sflag [#allocation3], 1
    %236 = vsyncpa %s235, 1
    %237 = vsyncpa [#allocation4], 1
    %s238 = scalar_lea.sflag [#allocation4], 1
    %239 = vsyncpa %s238, 1

</llo_original>
